<compile_context>
chip_gen: v6e
topology: v6e:2x2x1
jax: 0.10.0
libtpu: 0.0.40
codegen_flags: <defaults>
</compile_context>

<pallas_src>
import functools

import jax
import jax.numpy as jnp
from jax.experimental import pallas as pl
from jax.experimental.pallas import tpu as pltpu

NEG = -1.0e12


def _round_up(v, m):
    return (v + m - 1) // m * m


def encoder_char_kernel(x_ref, mask_ref, seg_ref,          # [M, D4p] bf16, [1,Bt,Lp] f32, [Bt*Wp, Bt*Lp] bf16
                        wfc_ref, bfc_ref,                  # small_fc          (bf16 / f32)
                        wfused_ref, bfused_ref,            # [W_x | W22 | W1]  (bf16 / f32)
                        w21_ref, b21_ref,                  # DDense_s2t_2_1 as a VPU row (f32)
                        word_ref, sent_ref,                # [Bt*Wp, Hp] f32, [1, Bt, Hp] f32
                        *, bt, lp, hp, hd):
    f32 = jnp.float32
    bf16 = jnp.bfloat16

    # ---- small_fc over the whole (Bt*Lp)-row block: one bf16 MXU pass, f32 acc
    o = jnp.dot(x_ref[...], wfc_ref[...],
                preferred_element_type=f32) + bfc_ref[...]                     # [M, Dp]

    # ---- fused projections of o: output columns = [ H | A_2 | pre-ReLU(A) ]
    p = jnp.dot(o.astype(bf16), wfused_ref[...],
                preferred_element_type=f32) + bfused_ref[...]                  # [M, 2Hp+Dp]
    h_all = p[:, :hp]                                                          # DDense_x
    a2_all = p[:, hp:2 * hp]                                                   # DDense_s2t_2_2
    at_all = jnp.maximum(p[:, 2 * hp:], 0.0)                                   # ReLU(DDense_s2t_1)

    # ---- DDense_s2t_2_1 (out_dim = 1): VPU mul + XLU lane reduce (MXU stays free)
    a1_all = jnp.sum(at_all * w21_ref[...], axis=-1, keepdims=True) + b21_ref[...]   # [M, 1]

    # mean over the *true* Hd columns (padded W22/b22 columns are exactly zero)
    a_all = a1_all + a2_all - jnp.sum(a2_all, axis=-1, keepdims=True) * (1.0 / hd)   # [M, Hp]

    # ---- vectorized epilogue on the full [Bt, Lp, Hp] slab (no per-row unroll)
    h3 = h_all.reshape(bt, lp, hp)
    a3 = a_all.reshape(bt, lp, hp)
    valid = mask_ref[0][:, :, None] > 0.5                  # [Bt, Lp, 1]: pos < char_len
    h3 = jnp.where(valid, h3, 0.0)                         # 'multiple' mask
    a3 = jnp.where(valid, a3, NEG)                         # 'addition' mask

    # softmax over the sequence axis (torch dim=1) -> sentence embedding
    a_max = jnp.max(a3, axis=1, keepdims=True)             # [Bt, 1, Hp]
    e_sm = jnp.exp(a3 - a_max)                             # the ONLY full-slab exp
    inv = pl.reciprocal(jnp.sum(e_sm, axis=1, keepdims=True), approx=True)     # [Bt, 1, Hp]
    sent = jnp.sum(e_sm * h3, axis=1, keepdims=True) * inv                     # [Bt, 1, Hp]
    sent_ref[0] = sent[:, 0, :].astype(sent_ref.dtype)     # one dense [Bt, Hp] store

    # exp(clip(A, NEG, 10)) == exp(a_max) * min(e_sm, exp(10 - a_max)); the per-column
    # exp(a_max) factor cancels exactly in num/den, so only the cheap [Bt,1,Hp] exp
    # is computed.  (10 - a_max) is clamped so fully-masked padded rows never give inf.
    cap = jnp.exp(jnp.minimum(10.0 - a_max, 80.0))         # [Bt, 1, Hp]
    ae = jnp.minimum(e_sm, cap)                            # [Bt, Lp, Hp]

    # ---- word_emb: ONE block-diagonal seg matmul each for numerator / denominator
    aeh = (ae * h3).reshape(bt * lp, hp).astype(bf16)
    aef = ae.reshape(bt * lp, hp).astype(bf16)
    num = jnp.dot(seg_ref[...], aeh, preferred_element_type=f32)               # [Bt*Wp, Hp]
    den = jnp.dot(seg_ref[...], aef, preferred_element_type=f32)
    word_ref[...] = (num * pl.reciprocal(den + 1e-12, approx=True)).astype(word_ref.dtype)


def encoder_char_forward(x, char_len, seg_mask, params, *, block_batch=None):
    """x: [B, L, 4*bert] f32, char_len: [B] i32, seg_mask: [B, W, L] f32."""
    B, L, D4 = x.shape
    Wn = seg_mask.shape[1]
    D = params["W_fc"].shape[1]
    Hd = params["W_x"].shape[1]

    # lane / sublane friendly padded sizes
    Lp = _round_up(L, 8)
    D4p = _round_up(D4, 128)
    Dp = _round_up(D, 128)
    Hp = _round_up(Hd, 128)
    Wp = _round_up(Wn, 8)

    # Rows per grid step: target M = Bt*Lp >= 512 (fills the 256x256 MXU on v6e/v7x
    # and amortizes per-step overhead), capped so the grid has >= 2 steps (v7x
    # megacore + DMA/compute overlap) and the block-diag seg block stays bounded.
    if block_batch is not None:
        Bt = int(block_batch)
    else:
        Bt = max(1, 512 // Lp)
        Bt = min(Bt, max(1, (B + 1) // 2))                         # grid >= 2 steps
        while Bt > 1 and ((Bt * Wp) * (Bt * Lp) + (Bt * Lp) * D4p) * 2 > (12 << 20):
            Bt = max(1, Bt // 2)
    Bp = _round_up(B, Bt)
    G = Bp // Bt
    M = Bt * Lp
    Np = 2 * Hp + Dp

    f32, bf16 = jnp.float32, jnp.bfloat16

    def pad2(a, r, c):
        return jnp.pad(a, ((0, r - a.shape[0]), (0, c - a.shape[1])))

    # --- activations (padded batch rows behave as char_len == 0; their garbage
    #     sent/word rows are sliced away at the end) ---
    x_p = jnp.pad(x, ((0, Bp - B), (0, Lp - L), (0, D4p - D4))).astype(bf16)
    x_p = x_p.reshape(Bp * Lp, D4p)                                 # flat [Bp*Lp, D4p]

    len_p = jnp.pad(char_len.astype(jnp.int32), (0, Bp - B))
    mask_p = (jnp.arange(Lp)[None, :] < len_p[:, None]).astype(f32)  # [Bp, Lp]
    mask_p = mask_p.reshape(G, Bt, Lp)

    # block-diagonal seg layout: one lane-dense [Bt*Wp, Bt*Lp] matmul per grid step
    seg_p = jnp.pad(seg_mask, ((0, Bp - B), (0, Wp - Wn), (0, Lp - L)))
    seg_g = seg_p.reshape(G, Bt, Wp, Lp)
    eye = jnp.eye(Bt, dtype=seg_p.dtype)
    seg_bd = jnp.einsum("gbwl,bc->gbwcl", seg_g, eye)               # [G, Bt, Wp, Bt, Lp]
    seg_bd = seg_bd.reshape(G * Bt * Wp, Bt * Lp).astype(bf16)

    # --- weights: pad with zeros, fuse the three projections that consume `o` ---
    w_fc = pad2(params["W_fc"], D4p, Dp).astype(bf16)
    b_fc = pad2(params["b_fc"], 1, Dp).astype(f32)
    w_fused = jnp.concatenate(
        [pad2(params["W_x"], Dp, Hp),            # H      (no bias)
         pad2(params["W22"], Dp, Hp),            # A_2
         pad2(params["W1"], Dp, Dp)], axis=1).astype(bf16)          # pre-ReLU(A)
    b_fused = jnp.concatenate(
        [jnp.zeros((1, Hp), f32),
         pad2(params["b22"], 1, Hp).astype(f32),
         pad2(params["b1"], 1, Dp).astype(f32)], axis=1)            # [1, 2Hp+Dp]
    w21_row = pad2(params["W21"].T, 1, Dp).astype(f32)              # [1, Dp]
    b21 = params["b21"].astype(f32)                                 # [1, 1]

    # TODO(synk): on v7x these grid-invariant weight specs could use
    # pipeline_mode=pl.Buffered(1) to halve weight VMEM; kept default for safety.
    const = lambda shape: pl.BlockSpec(shape, lambda b: (0,) * len(shape))
    kernel = functools.partial(encoder_char_kernel, bt=Bt, lp=Lp, hp=Hp, hd=Hd)

    grid_spec = pltpu.PrefetchScalarGridSpec(
        num_scalar_prefetch=0,
        grid=(G,),
        in_specs=[
            pl.BlockSpec((M, D4p), lambda b: (b, 0)),               # x (flat rows)
            pl.BlockSpec((1, Bt, Lp), lambda b: (b, 0, 0)),         # validity mask
            pl.BlockSpec((Bt * Wp, Bt * Lp), lambda b: (b, 0)),     # block-diag seg
            const((D4p, Dp)), const((1, Dp)),
            const((Dp, Np)), const((1, Np)),
            const((1, Dp)), const((1, 1)),
        ],
        out_specs=[
            pl.BlockSpec((Bt * Wp, Hp), lambda b: (b, 0)),          # word (flat rows)
            pl.BlockSpec((1, Bt, Hp), lambda b: (b, 0, 0)),         # sent (dense slab)
        ],
    )

    # VMEM limit sized from the actual blocks (double-buffered inputs/outputs +
    # f32 intermediates), clamped below physical VMEM for the current generation.
    block_bytes = (
        2 * M * D4p * 2                               # x blocks (bf16, double-buffered)
        + 2 * Bt * Lp * 4                             # mask
        + 2 * (Bt * Wp) * (Bt * Lp) * 2               # block-diag seg
        + 2 * (D4p * Dp + Dp * Np) * 2                # bf16 weights (double-buffered)
        + 2 * (Np + 2 * Dp + 2) * 4                   # biases / w21 row
        + 2 * (Bt * Wp * Hp + Bt * Hp) * 4            # outputs
        + 8 * M * max(Np, Hp) * 4                     # in-kernel f32 intermediates
    )
    try:
        vmem_cap = pltpu.get_tpu_info().vmem_capacity_bytes
    except Exception:
        vmem_cap = 64 << 20                           # conservative (v7x-sized)
    vmem_bytes = int(min(max(block_bytes * 5 // 4, 16 << 20), vmem_cap - (8 << 20)))

    word_p, sent_p = pl.pallas_call(
        kernel,
        grid_spec=grid_spec,
        out_shape=(
            jax.ShapeDtypeStruct((Bp * Wp, Hp), f32),
            jax.ShapeDtypeStruct((G, Bt, Hp), f32),
        ),
        compiler_params=pltpu.CompilerParams(
            dimension_semantics=("parallel",),        # batch blocks independent (2 TCs on v7x)
            vmem_limit_bytes=vmem_bytes),
    )(x_p, mask_p, seg_bd, w_fc, b_fc, w_fused, b_fused, w21_row, b21)

    word = word_p.reshape(Bp, Wp, Hp)[:B, :Wn, :Hd]
    sent = sent_p.reshape(Bp, Hp)[:B, :Hd]
    return word, sent


def reference_forward(x, char_len, seg_mask, params):
    L = x.shape[1]
    o = jnp.einsum("blk,kd->bld", x, params["W_fc"]) + params["b_fc"][0]
    valid = jnp.arange(L)[None, :, None] < char_len[:, None, None]
    H = jnp.where(valid, jnp.einsum("bld,dh->blh", o, params["W_x"]), 0.0)
    At = jax.nn.relu(jnp.einsum("bld,de->ble", o, params["W1"]) + params["b1"][0])
    A1 = jnp.where(valid, jnp.einsum("bld,do->blo", At, params["W21"]) + params["b21"][0], NEG)
    A2 = jnp.where(valid, jnp.einsum("bld,dh->blh", o, params["W22"]) + params["b22"][0], NEG)
    A = A1 + A2 - jnp.mean(A2, axis=-1, keepdims=True)
    A_soft = jax.nn.softmax(A, axis=1)
    sent = jnp.sum(A_soft * H, axis=1)
    Ae = jnp.exp(jnp.clip(A, NEG, 10.0))
    word = (jnp.einsum("bwl,blh->bwh", seg_mask, Ae * H)
            / (jnp.einsum("bwl,blh->bwh", seg_mask, Ae) + 1e-12))
    return word, sent


if __name__ == "__main__":
    B, L, D, Hd, Wn = 4, 8, 32, 32, 4     # batch, seq, bert_size, hidden_size, #words
    key = jax.random.PRNGKey(0)
    ks = jax.random.split(key, 12)
    s = 0.1
    params = {
        "W_fc": jax.random.normal(ks[0], (4 * D, D), jnp.float32) * s,
        "b_fc": jax.random.normal(ks[1], (1, D), jnp.float32) * s,
        "W_x":  jax.random.normal(ks[2], (D, Hd), jnp.float32) * s,
        "W1":   jax.random.normal(ks[3], (D, D), jnp.float32) * s,
        "b1":   jax.random.normal(ks[4], (1, D), jnp.float32) * s,
        "W21":  jax.random.normal(ks[5], (D, 1), jnp.float32) * s,
        "b21":  jax.random.normal(ks[6], (1, 1), jnp.float32) * s,
        "W22":  jax.random.normal(ks[7], (D, Hd), jnp.float32) * s,
        "b22":  jax.random.normal(ks[8], (1, Hd), jnp.float32) * s,
    }

    # synthesized "concatenated last-4 BERT hidden layers"
    x = jax.random.normal(ks[9], (B, L, 4 * D), jnp.float32)
    char_len = jnp.array([8, 5, 7, 3], dtype=jnp.int32)
    # each word spans 2 consecutive chars
    seg_mask = jnp.zeros((B, Wn, L), jnp.float32)
    for w in range(Wn):
        seg_mask = seg_mask.at[:, w, 2 * w:2 * w + 2].set(1.0)

    word_emb, sent_emb = encoder_char_forward(x, char_len, seg_mask, params)
    jax.block_until_ready((word_emb, sent_emb))

    word_ref, sent_ref = reference_forward(x, char_len, seg_mask, params)
    # kernel uses bf16 MXU operands (f32 accumulation) + approx reciprocals
    # -> compare with bf16-level tolerance
    assert jnp.allclose(word_emb, word_ref, atol=5e-2, rtol=5e-2), "word_emb mismatch"
    assert jnp.allclose(sent_emb, sent_ref, atol=5e-2, rtol=5e-2), "sent_emb mismatch"

    print("KERNEL_OK")
</pallas_src>

<mosaic_0001>
module attributes {stable_mosaic.version = 11 : i64} {
  func.func @encoder_char_kernel(%arg0: i32, %arg1: memref<16x128xbf16, #tpu.memory_space<vmem>>, %arg2: memref<1x2x8xf32, #tpu.memory_space<vmem>>, %arg3: memref<16x16xbf16, #tpu.memory_space<vmem>>, %arg4: memref<128x128xbf16, #tpu.memory_space<vmem>>, %arg5: memref<1x128xf32, #tpu.memory_space<vmem>>, %arg6: memref<128x384xbf16, #tpu.memory_space<vmem>>, %arg7: memref<1x384xf32, #tpu.memory_space<vmem>>, %arg8: memref<1x128xf32, #tpu.memory_space<vmem>>, %arg9: memref<1x1xf32, #tpu.memory_space<vmem>>, %arg10: memref<16x128xf32, #tpu.memory_space<vmem>>, %arg11: memref<1x2x128xf32, #tpu.memory_space<vmem>>) attributes {dimension_semantics = [#tpu.dimension_semantics<parallel>], iteration_bounds = array<i64: 2>, scalar_prefetch = 0 : i64, scratch_operands = 0 : i64, tpu.core_type = #tpu.core_type<tc>, window_params = [{transform_indices = @transform_0, window_bounds = array<i64: 16, 128>}, {transform_indices = @transform_1, window_bounds = array<i64: 1, 2, 8>}, {transform_indices = @transform_2, window_bounds = array<i64: 16, 16>}, {pipeline_mode = #tpu.pipeline_mode<synchronous>, transform_indices = @transform_3, window_bounds = array<i64: 128, 128>}, {pipeline_mode = #tpu.pipeline_mode<synchronous>, transform_indices = @transform_4, window_bounds = array<i64: 1, 128>}, {pipeline_mode = #tpu.pipeline_mode<synchronous>, transform_indices = @transform_5, window_bounds = array<i64: 128, 384>}, {pipeline_mode = #tpu.pipeline_mode<synchronous>, transform_indices = @transform_6, window_bounds = array<i64: 1, 384>}, {pipeline_mode = #tpu.pipeline_mode<synchronous>, transform_indices = @transform_7, window_bounds = array<i64: 1, 128>}, {pipeline_mode = #tpu.pipeline_mode<synchronous>, transform_indices = @transform_8, window_bounds = array<i64: 1, 1>}, {transform_indices = @transform_9, window_bounds = array<i64: 16, 128>}, {transform_indices = @transform_10, window_bounds = array<i64: 1, 2, 128>}]} {
    %c0 = arith.constant 0 : index
    %c0_0 = arith.constant 0 : index
    %0 = vector.load %arg1[%c0, %c0_0] : memref<16x128xbf16, #tpu.memory_space<vmem>>, vector<16x128xbf16>
    %c0_1 = arith.constant 0 : index
    %c0_2 = arith.constant 0 : index
    %1 = vector.load %arg4[%c0_1, %c0_2] : memref<128x128xbf16, #tpu.memory_space<vmem>>, vector<128x128xbf16>
    %cst = arith.constant dense<0.000000e+00> : vector<16x128xf32>
    %2 = tpu.matmul %0, %1, %cst {dimension_numbers = #tpu.dot_dimension_numbers<[1], [0], [0], [1], [0, 0, 1, 1], [], []>} : vector<16x128xbf16>, vector<128x128xbf16>, vector<16x128xf32> -> vector<16x128xf32>
    %c0_3 = arith.constant 0 : index
    %c0_4 = arith.constant 0 : index
    %3 = vector.load %arg5[%c0_3, %c0_4] : memref<1x128xf32, #tpu.memory_space<vmem>>, vector<1x128xf32>
    %4 = vector.broadcast %3 : vector<1x128xf32> to vector<16x128xf32>
    %5 = arith.addf %2, %4 : vector<16x128xf32>
    %6 = arith.truncf %5 : vector<16x128xf32> to vector<16x128xbf16>
    %c0_5 = arith.constant 0 : index
    %c0_6 = arith.constant 0 : index
    %7 = vector.load %arg6[%c0_5, %c0_6] : memref<128x384xbf16, #tpu.memory_space<vmem>>, vector<128x384xbf16>
    %cst_7 = arith.constant dense<0.000000e+00> : vector<16x384xf32>
    %8 = tpu.matmul %6, %7, %cst_7 {dimension_numbers = #tpu.dot_dimension_numbers<[1], [0], [0], [1], [0, 0, 1, 1], [], []>} : vector<16x128xbf16>, vector<128x384xbf16>, vector<16x384xf32> -> vector<16x384xf32>
    %c0_8 = arith.constant 0 : index
    %c0_9 = arith.constant 0 : index
    %9 = vector.load %arg7[%c0_8, %c0_9] : memref<1x384xf32, #tpu.memory_space<vmem>>, vector<1x384xf32>
    %10 = vector.broadcast %9 : vector<1x384xf32> to vector<16x384xf32>
    %11 = arith.addf %8, %10 : vector<16x384xf32>
    %12 = vector.extract_strided_slice %11 {offsets = [0, 0], sizes = [16, 128], strides = [1, 1]} : vector<16x384xf32> to vector<16x128xf32>
    %13 = vector.extract_strided_slice %11 {offsets = [0, 128], sizes = [16, 128], strides = [1, 1]} : vector<16x384xf32> to vector<16x128xf32>
    %14 = vector.extract_strided_slice %11 {offsets = [0, 256], sizes = [16, 128], strides = [1, 1]} : vector<16x384xf32> to vector<16x128xf32>
    %cst_10 = arith.constant 0.000000e+00 : f32
    %15 = vector.broadcast %cst_10 : f32 to vector<16x128xf32>
    %16 = arith.maximumf %14, %15 : vector<16x128xf32>
    %c0_11 = arith.constant 0 : index
    %c0_12 = arith.constant 0 : index
    %17 = vector.load %arg8[%c0_11, %c0_12] : memref<1x128xf32, #tpu.memory_space<vmem>>, vector<1x128xf32>
    %18 = vector.broadcast %17 : vector<1x128xf32> to vector<16x128xf32>
    %19 = arith.mulf %16, %18 : vector<16x128xf32>
    %cst_13 = arith.constant dense<0.000000e+00> : vector<16xf32>
    %20 = vector.multi_reduction <add>, %19, %cst_13 [1] : vector<16x128xf32> to vector<16xf32>
    %21 = vector.shape_cast %20 : vector<16xf32> to vector<16x1xf32>
    %c0_14 = arith.constant 0 : index
    %c0_15 = arith.constant 0 : index
    %22 = vector.load %arg9[%c0_14, %c0_15] : memref<1x1xf32, #tpu.memory_space<vmem>>, vector<1x1xf32>
    %23 = vector.broadcast %22 : vector<1x1xf32> to vector<16x1xf32>
    %24 = arith.addf %21, %23 : vector<16x1xf32>
    %25 = vector.broadcast %24 : vector<16x1xf32> to vector<16x128xf32>
    %26 = arith.addf %25, %13 : vector<16x128xf32>
    %cst_16 = arith.constant dense<0.000000e+00> : vector<16xf32>
    %27 = vector.multi_reduction <add>, %13, %cst_16 [1] : vector<16x128xf32> to vector<16xf32>
    %28 = vector.shape_cast %27 : vector<16xf32> to vector<16x1xf32>
    %cst_17 = arith.constant 3.125000e-02 : f32
    %29 = vector.broadcast %cst_17 : f32 to vector<16x1xf32>
    %30 = arith.mulf %28, %29 : vector<16x1xf32>
    %31 = vector.broadcast %30 : vector<16x1xf32> to vector<16x128xf32>
    %32 = arith.subf %26, %31 : vector<16x128xf32>
    %33 = vector.shape_cast %12 : vector<16x128xf32> to vector<2x8x128xf32>
    %34 = vector.shape_cast %32 : vector<16x128xf32> to vector<2x8x128xf32>
    %c0_18 = arith.constant 0 : index
    %c0_19 = arith.constant 0 : index
    %c0_20 = arith.constant 0 : index
    %35 = vector.load %arg2[%c0_18, %c0_19, %c0_20] : memref<1x2x8xf32, #tpu.memory_space<vmem>>, vector<1x2x8xf32>
    %36 = vector.shape_cast %35 : vector<1x2x8xf32> to vector<2x8xf32>
    %37 = vector.shape_cast %36 : vector<2x8xf32> to vector<2x8x1xf32>
    %cst_21 = arith.constant 5.000000e-01 : f32
    %38 = vector.broadcast %cst_21 : f32 to vector<2x8x1xf32>
    %39 = arith.cmpf ogt, %37, %38 : vector<2x8x1xf32>
    %cst_22 = arith.constant 0.000000e+00 : f32
    %40 = vector.shape_cast %39 : vector<2x8x1xi1> to vector<2x8x1xi1>
    %41 = vector.broadcast %40 : vector<2x8x1xi1> to vector<2x8x128xi1>
    %42 = vector.broadcast %cst_22 : f32 to vector<2x8x128xf32>
    %43 = arith.select %41, %33, %42 : vector<2x8x128xi1>, vector<2x8x128xf32>
    %cst_23 = arith.constant -9.99999995E+11 : f32
    %44 = vector.shape_cast %39 : vector<2x8x1xi1> to vector<2x8x1xi1>
    %45 = vector.broadcast %44 : vector<2x8x1xi1> to vector<2x8x128xi1>
    %46 = vector.broadcast %cst_23 : f32 to vector<2x8x128xf32>
    %47 = arith.select %45, %34, %46 : vector<2x8x128xi1>, vector<2x8x128xf32>
    %cst_24 = arith.constant dense<0xFF800000> : vector<2x128xf32>
    %48 = vector.multi_reduction <maximumf>, %47, %cst_24 [1] : vector<2x8x128xf32> to vector<2x128xf32>
    %49 = vector.shape_cast %48 : vector<2x128xf32> to vector<2x1x128xf32>
    %50 = vector.broadcast %49 : vector<2x1x128xf32> to vector<2x8x128xf32>
    %51 = arith.subf %47, %50 : vector<2x8x128xf32>
    %52 = math.exp %51 : vector<2x8x128xf32>
    %cst_25 = arith.constant dense<0.000000e+00> : vector<2x128xf32>
    %53 = vector.multi_reduction <add>, %52, %cst_25 [1] : vector<2x8x128xf32> to vector<2x128xf32>
    %54 = vector.shape_cast %53 : vector<2x128xf32> to vector<2x1x128xf32>
    %55 = tpu.reciprocal %54 {approx = true} : vector<2x1x128xf32> -> vector<2x1x128xf32>
    %56 = arith.mulf %52, %43 : vector<2x8x128xf32>
    %cst_26 = arith.constant dense<0.000000e+00> : vector<2x128xf32>
    %57 = vector.multi_reduction <add>, %56, %cst_26 [1] : vector<2x8x128xf32> to vector<2x128xf32>
    %58 = vector.shape_cast %57 : vector<2x128xf32> to vector<2x1x128xf32>
    %59 = arith.mulf %58, %55 : vector<2x1x128xf32>
    %60 = vector.shape_cast %59 : vector<2x1x128xf32> to vector<2x128xf32>
    %c0_27 = arith.constant 0 : index
    %c0_28 = arith.constant 0 : index
    %c0_29 = arith.constant 0 : index
    %61 = vector.load %arg11[%c0_27, %c0_28, %c0_29] : memref<1x2x128xf32, #tpu.memory_space<vmem>>, vector<1x2x128xf32>
    %62 = vector.shape_cast %61 : vector<1x2x128xf32> to vector<2x128xf32>
    %63 = vector.shape_cast %60 : vector<2x128xf32> to vector<1x2x128xf32>
    tpu.vector_store %arg11[%c0_27, %c0_28, %c0_29], %63 {strides = array<i32>} : memref<1x2x128xf32, #tpu.memory_space<vmem>>, vector<1x2x128xf32>,
    %cst_30 = arith.constant 1.000000e+01 : f32
    %64 = vector.broadcast %cst_30 : f32 to vector<2x1x128xf32>
    %65 = arith.subf %64, %49 : vector<2x1x128xf32>
    %cst_31 = arith.constant 8.000000e+01 : f32
    %66 = vector.broadcast %cst_31 : f32 to vector<2x1x128xf32>
    %67 = arith.minimumf %65, %66 : vector<2x1x128xf32>
    %68 = math.exp %67 : vector<2x1x128xf32>
    %69 = vector.broadcast %68 : vector<2x1x128xf32> to vector<2x8x128xf32>
    %70 = arith.minimumf %52, %69 : vector<2x8x128xf32>
    %71 = arith.mulf %70, %43 : vector<2x8x128xf32>
    %72 = vector.shape_cast %71 : vector<2x8x128xf32> to vector<16x128xf32>
    %73 = arith.truncf %72 : vector<16x128xf32> to vector<16x128xbf16>
    %74 = vector.shape_cast %70 : vector<2x8x128xf32> to vector<16x128xf32>
    %75 = arith.truncf %74 : vector<16x128xf32> to vector<16x128xbf16>
    %c0_32 = arith.constant 0 : index
    %c0_33 = arith.constant 0 : index
    %76 = vector.load %arg3[%c0_32, %c0_33] : memref<16x16xbf16, #tpu.memory_space<vmem>>, vector<16x16xbf16>
    %cst_34 = arith.constant dense<0.000000e+00> : vector<16x128xf32>
    %77 = tpu.matmul %76, %73, %cst_34 {dimension_numbers = #tpu.dot_dimension_numbers<[1], [0], [0], [1], [0, 0, 1, 1], [], []>} : vector<16x16xbf16>, vector<16x128xbf16>, vector<16x128xf32> -> vector<16x128xf32>
    %c0_35 = arith.constant 0 : index
    %c0_36 = arith.constant 0 : index
    %78 = vector.load %arg3[%c0_35, %c0_36] : memref<16x16xbf16, #tpu.memory_space<vmem>>, vector<16x16xbf16>
    %cst_37 = arith.constant dense<0.000000e+00> : vector<16x128xf32>
    %79 = tpu.matmul %78, %75, %cst_37 {dimension_numbers = #tpu.dot_dimension_numbers<[1], [0], [0], [1], [0, 0, 1, 1], [], []>} : vector<16x16xbf16>, vector<16x128xbf16>, vector<16x128xf32> -> vector<16x128xf32>
    %cst_38 = arith.constant 9.99999996E-13 : f32
    %80 = vector.broadcast %cst_38 : f32 to vector<16x128xf32>
    %81 = arith.addf %79, %80 : vector<16x128xf32>
    %82 = tpu.reciprocal %81 {approx = true} : vector<16x128xf32> -> vector<16x128xf32>
    %83 = arith.mulf %77, %82 : vector<16x128xf32>
    %c0_39 = arith.constant 0 : index
    %c0_40 = arith.constant 0 : index
    %84 = vector.load %arg10[%c0_39, %c0_40] : memref<16x128xf32, #tpu.memory_space<vmem>>, vector<16x128xf32>
    tpu.vector_store %arg10[%c0_39, %c0_40], %83 {strides = array<i32>} : memref<16x128xf32, #tpu.memory_space<vmem>>, vector<16x128xf32>,
    return
  }
  func.func @transform_0(%arg0: i32) -> (i32, i32) {
    %c0_i32 = arith.constant 0 : i32
    %c0_i32_0 = arith.constant 0 : i32
    return %arg0, %c0_i32 : i32, i32
  }
  func.func @transform_1(%arg0: i32) -> (i32, i32, i32) {
    %c0_i32 = arith.constant 0 : i32
    %c0_i32_0 = arith.constant 0 : i32
    %c0_i32_1 = arith.constant 0 : i32
    return %arg0, %c0_i32, %c0_i32_0 : i32, i32, i32
  }
  func.func @transform_2(%arg0: i32) -> (i32, i32) {
    %c0_i32 = arith.constant 0 : i32
    %c0_i32_0 = arith.constant 0 : i32
    return %arg0, %c0_i32 : i32, i32
  }
  func.func @transform_3(%arg0: i32) -> (i32, i32) {
    %c0_i32 = arith.constant 0 : i32
    %c0_i32_0 = arith.constant 0 : i32
    %c0_i32_1 = arith.constant 0 : i32
    return %c0_i32, %c0_i32_0 : i32, i32
  }
  func.func @transform_4(%arg0: i32) -> (i32, i32) {
    %c0_i32 = arith.constant 0 : i32
    %c0_i32_0 = arith.constant 0 : i32
    %c0_i32_1 = arith.constant 0 : i32
    return %c0_i32, %c0_i32_0 : i32, i32
  }
  func.func @transform_5(%arg0: i32) -> (i32, i32) {
    %c0_i32 = arith.constant 0 : i32
    %c0_i32_0 = arith.constant 0 : i32
    %c0_i32_1 = arith.constant 0 : i32
    return %c0_i32, %c0_i32_0 : i32, i32
  }
  func.func @transform_6(%arg0: i32) -> (i32, i32) {
    %c0_i32 = arith.constant 0 : i32
    %c0_i32_0 = arith.constant 0 : i32
    %c0_i32_1 = arith.constant 0 : i32
    return %c0_i32, %c0_i32_0 : i32, i32
  }
  func.func @transform_7(%arg0: i32) -> (i32, i32) {
    %c0_i32 = arith.constant 0 : i32
    %c0_i32_0 = arith.constant 0 : i32
    %c0_i32_1 = arith.constant 0 : i32
    return %c0_i32, %c0_i32_0 : i32, i32
  }
  func.func @transform_8(%arg0: i32) -> (i32, i32) {
    %c0_i32 = arith.constant 0 : i32
    %c0_i32_0 = arith.constant 0 : i32
    %c0_i32_1 = arith.constant 0 : i32
    return %c0_i32, %c0_i32_0 : i32, i32
  }
  func.func @transform_9(%arg0: i32) -> (i32, i32) {
    %c0_i32 = arith.constant 0 : i32
    %c0_i32_0 = arith.constant 0 : i32
    return %arg0, %c0_i32 : i32, i32
  }
  func.func @transform_10(%arg0: i32) -> (i32, i32, i32) {
    %c0_i32 = arith.constant 0 : i32
    %c0_i32_0 = arith.constant 0 : i32
    %c0_i32_1 = arith.constant 0 : i32
    return %arg0, %c0_i32, %c0_i32_0 : i32, i32, i32
  }
}

</mosaic_0001>

<llo_original>
// kernel: tpu_custom_call.1
$region0: #{tpu_custom_call.1}
  #allocation0 [shape = 'u32[]', space=smem, size = 0x4, offset = 0x4, fixed_abs, tag = 'smem constant byte address 0x4 - core index']
  #allocation1 [shape = 'u32[144,128]{1,0:T(1,128)}', space=vmem, size = 0x12000, scoped, tag = 'internal scratch']
  #allocation2 [shape = 'f32[1,1]{1,0:T(1,128)S(1)}', space=vmem, size = 0x200, scoped, tag = 'scoped memory for tpu_custom_call.1']
  %s0 = inlined_call_operand.vmem [shape: bf16[32,128], index: 0, kind: input, shape index: {}]
  %s1 = inlined_call_operand.vmem [shape: f32[2,2,8], index: 1, kind: input, shape index: {}]
  %s2 = inlined_call_operand.vmem [shape: bf16[32,16], index: 2, kind: input, shape index: {}]
  %s3 = inlined_call_operand.hbm [shape: bf16[128,128], index: 3, kind: input, shape index: {}]
  %s4 = inlined_call_operand.vmem [shape: f32[1,128], index: 4, kind: input, shape index: {}]
  %s5 = inlined_call_operand.hbm [shape: bf16[128,384], index: 5, kind: input, shape index: {}]
  %s6 = inlined_call_operand.vmem [shape: f32[1,384], index: 6, kind: input, shape index: {}]
  %s7 = inlined_call_operand.vmem [shape: f32[1,128], index: 7, kind: input, shape index: {}]
  %s8 = inlined_call_operand.<no memory space> [shape: f32[1,1], index: 8, kind: input, shape index: {}]
  %s9 = inlined_call_operand.hbm [shape: f32[32,128], index: 9, kind: output, shape index: {0}]
  %s10 = inlined_call_operand.hbm [shape: f32[2,2,128], index: 10, kind: output, shape index: {1}]
  %11 = xla_tuple %s9, %s10
  %s12 = sld [smem:[#allocation0]]
  $region85: #{tpu_custom_call.1} parent=0
    _
  %s14 = ssub.s32 1, %s12
  %s15 = scalar_select 0, %s14, %s12
  %v16 = vstv %s8
  %17 = vst [vmem:[#allocation2] sm:$0x1] %v16
  $region1: #{tpu_custom_call.1} parent=0
    #allocation3 [shape = 'u8[32768]{0}', space=vmem, size = 0x8000, scoped, tag = 'input window, operand 3, single buffered']
    #allocation4 [shape = 's32[2]{0}', space=sflag, size = 0x8, scoped, tag = 'scoped memory for tpu_custom_call.1']
    #allocation5 [shape = 's32[2]{0}', space=sflag, size = 0x8, scoped, tag = 'scoped memory for tpu_custom_call.1']
    #allocation6 [shape = 'u8[98304]{0}', space=vmem, size = 0x18000, scoped, tag = 'input window, operand 5, single buffered']
    #allocation7 [shape = 's32[1]{0}', space=sflag, size = 0x4, scoped, tag = 'scoped memory for tpu_custom_call.1']
    #allocation8 [shape = 'u8[16384]{0}', space=vmem, size = 0x4000, scoped, tag = 'output window, operand 0']
    #allocation9 [shape = 'u8[2048]{0}', space=vmem, size = 0x800, scoped, tag = 'output window, operand 1']
    #allocation10 [shape = 's32[2]{0}', space=sflag, size = 0x8, scoped, tag = 'scoped memory for tpu_custom_call.1']
    %18 = vsyncpa [#allocation4], 0
    %19 = vsyncpa [#allocation7], 0
    %20 = vsyncpa [#allocation5], 0
    %s21 = scalar_lea.sflag [#allocation5], 1
    %22 = vsyncpa %s21, 0
    %23 = vsyncpa [#allocation10], 0
    %s24 = scalar_lea.sflag [#allocation10], 1
    %25 = vsyncpa %s24, 0
    loop: start=0, step=1, limit=4
    $region2: #{tpu_custom_call.1} parent=1 // loop_pre_header
      _
    $region3: #{tpu_custom_call.1} parent=1 // loop_header
      %s27 = sphi 0, %s31
      %p28 = scmp.ge.s32.totalorder %s27, 4
      %s37 = sphi 0, %s39
      %s40 = sphi 0, %s37
      %s41 = sphi 0, %s40
      %s57 = sphi 0, %s41
      %s63 = sphi 0, %s65
      %s66 = sphi 0, %s63
      %s67 = sphi 0, %s66
      %s83 = sphi 0, %s67
      %s89 = sphi 0, %s91
      %s92 = sphi 0, %s89
      %s93 = sphi 0, %s92
      %s109 = sphi 0, %s93
      %s113 = sphi 0, %s113
      %s115 = sphi 0, %s113
      %s116 = sphi 0, %s115
      %s130 = sphi 0, %s116
      %s134 = sphi 0, %s134
      %s136 = sphi 0, %s134
      %s137 = sphi 0, %s136
      %s151 = sphi 0, %s137
      %s155 = sphi 0, %s155
      %s157 = sphi 0, %s155
      %s158 = sphi 0, %s157
      %s172 = sphi 0, %s158
      %s176 = sphi 0, %s176
      %s178 = sphi 0, %s176
      %s179 = sphi 0, %s178
      %s193 = sphi 0, %s179
      %s197 = sphi 0, %s197
      %s199 = sphi 0, %s197
      %s200 = sphi 0, %s199
      %s214 = sphi 0, %s200
      %s218 = sphi 0, %s218
      %s220 = sphi 0, %s218
      %s221 = sphi 0, %s220
      %s235 = sphi 0, %s221
      %s241 = sphi 0, %s243
      %s244 = sphi 0, %s241
      %s245 = sphi 0, %s244
      %s261 = sphi 0, %s245
      %s267 = sphi 0, %s269
      %s270 = sphi 0, %s267
      %s271 = sphi 0, %s270
      %s287 = sphi 0, %s271
    $region4: #{tpu_custom_call.1} parent=1 // loop_header_branch
      %30 = sbr.rel (%p28) target = $region8
    $region5: #{tpu_custom_call.1} parent=1 // loop_body
      %s32 = ssub.s32 %s27, 1
      %s33 = ssub.s32 %s27, 2
      %s34 = sadd.s32 %s27, 1
      %s35 = ssub.s32 %s27, %s34
      %p36 = scmp.eq.s32.totalorder %s35, 0
      %s38 = sadd.s32 %s37, 1
      %s39 = scalar_select %p36, %s37, %s38
      %p42 = pneg %p36
      %p43 = scmp.eq.s32.totalorder %s27, 1
      %p44 = por %p42, %p43
      %p45 = scmp.ne.s32.totalorder %s37, %s40
      %p46 = scmp.eq.s32.totalorder %s27, 0
      %p47 = por %p45, %p46
      %p48 = scmp.ne.s32.totalorder %s37, %s40
      %p49 = scmp.eq.s32.totalorder %s32, 1
      %p50 = por %p48, %p49
      %p51 = scmp.ne.s32.totalorder %s40, %s41
      %p52 = scmp.eq.s32.totalorder %s32, 0
      %p53 = por %p51, %p52
      %p54 = scmp.ne.s32.totalorder %s40, %s41
      %p55 = scmp.eq.s32.totalorder %s33, 1
      %p56 = por %p54, %p55
      %p58 = scmp.ne.s32.totalorder %s41, %s57
      %p59 = scmp.eq.s32.totalorder %s33, 0
      %p60 = por %p58, %p59
      %s61 = ssub.s32 %s27, %s34
      %p62 = scmp.eq.s32.totalorder %s61, 0
      %s64 = sadd.s32 %s63, 1
      %s65 = scalar_select %p62, %s63, %s64
      %p68 = pneg %p62
      %p69 = scmp.eq.s32.totalorder %s27, 1
      %p70 = por %p68, %p69
      %p71 = scmp.ne.s32.totalorder %s63, %s66
      %p72 = scmp.eq.s32.totalorder %s27, 0
      %p73 = por %p71, %p72
      %p74 = scmp.ne.s32.totalorder %s63, %s66
      %p75 = scmp.eq.s32.totalorder %s32, 1
      %p76 = por %p74, %p75
      %p77 = scmp.ne.s32.totalorder %s66, %s67
      %p78 = scmp.eq.s32.totalorder %s32, 0
      %p79 = por %p77, %p78
      %p80 = scmp.ne.s32.totalorder %s66, %s67
      %p81 = scmp.eq.s32.totalorder %s33, 1
      %p82 = por %p80, %p81
      %p84 = scmp.ne.s32.totalorder %s67, %s83
      %p85 = scmp.eq.s32.totalorder %s33, 0
      %p86 = por %p84, %p85
      %s87 = ssub.s32 %s27, %s34
      %p88 = scmp.eq.s32.totalorder %s87, 0
      %s90 = sadd.s32 %s89, 1
      %s91 = scalar_select %p88, %s89, %s90
      %p94 = pneg %p88
      %p95 = scmp.eq.s32.totalorder %s27, 1
      %p96 = por %p94, %p95
      %p97 = scmp.ne.s32.totalorder %s89, %s92
      %p98 = scmp.eq.s32.totalorder %s27, 0
      %p99 = por %p97, %p98
      %p100 = scmp.ne.s32.totalorder %s89, %s92
      %p101 = scmp.eq.s32.totalorder %s32, 1
      %p102 = por %p100, %p101
      %p103 = scmp.ne.s32.totalorder %s92, %s93
      %p104 = scmp.eq.s32.totalorder %s32, 0
      %p105 = por %p103, %p104
      %p106 = scmp.ne.s32.totalorder %s92, %s93
      %p107 = scmp.eq.s32.totalorder %s33, 1
      %p108 = por %p106, %p107
      %p110 = scmp.ne.s32.totalorder %s93, %s109
      %p111 = scmp.eq.s32.totalorder %s33, 0
      %p112 = por %p110, %p111
      %s114 = sadd.s32 %s113, 1
      %p117 = scmp.eq.s32.totalorder %s27, 1
      %p118 = scmp.ne.s32.totalorder %s113, %s115
      %p119 = scmp.eq.s32.totalorder %s27, 0
      %p120 = por %p118, %p119
      %p121 = scmp.ne.s32.totalorder %s113, %s115
      %p122 = scmp.eq.s32.totalorder %s32, 1
      %p123 = por %p121, %p122
      %p124 = scmp.ne.s32.totalorder %s115, %s116
      %p125 = scmp.eq.s32.totalorder %s32, 0
      %p126 = por %p124, %p125
      %p127 = scmp.ne.s32.totalorder %s115, %s116
      %p128 = scmp.eq.s32.totalorder %s33, 1
      %p129 = por %p127, %p128
      %p131 = scmp.ne.s32.totalorder %s116, %s130
      %p132 = scmp.eq.s32.totalorder %s33, 0
      %p133 = por %p131, %p132
      %s135 = sadd.s32 %s134, 1
      %p138 = scmp.eq.s32.totalorder %s27, 1
      %p139 = scmp.ne.s32.totalorder %s134, %s136
      %p140 = scmp.eq.s32.totalorder %s27, 0
      %p141 = por %p139, %p140
      %p142 = scmp.ne.s32.totalorder %s134, %s136
      %p143 = scmp.eq.s32.totalorder %s32, 1
      %p144 = por %p142, %p143
      %p145 = scmp.ne.s32.totalorder %s136, %s137
      %p146 = scmp.eq.s32.totalorder %s32, 0
      %p147 = por %p145, %p146
      %p148 = scmp.ne.s32.totalorder %s136, %s137
      %p149 = scmp.eq.s32.totalorder %s33, 1
      %p150 = por %p148, %p149
      %p152 = scmp.ne.s32.totalorder %s137, %s151
      %p153 = scmp.eq.s32.totalorder %s33, 0
      %p154 = por %p152, %p153
      %s156 = sadd.s32 %s155, 1
      %p159 = scmp.eq.s32.totalorder %s27, 1
      %p160 = scmp.ne.s32.totalorder %s155, %s157
      %p161 = scmp.eq.s32.totalorder %s27, 0
      %p162 = por %p160, %p161
      %p163 = scmp.ne.s32.totalorder %s155, %s157
      %p164 = scmp.eq.s32.totalorder %s32, 1
      %p165 = por %p163, %p164
      %p166 = scmp.ne.s32.totalorder %s157, %s158
      %p167 = scmp.eq.s32.totalorder %s32, 0
      %p168 = por %p166, %p167
      %p169 = scmp.ne.s32.totalorder %s157, %s158
      %p170 = scmp.eq.s32.totalorder %s33, 1
      %p171 = por %p169, %p170
      %p173 = scmp.ne.s32.totalorder %s158, %s172
      %p174 = scmp.eq.s32.totalorder %s33, 0
      %p175 = por %p173, %p174
      %s177 = sadd.s32 %s176, 1
      %p180 = scmp.eq.s32.totalorder %s27, 1
      %p181 = scmp.ne.s32.totalorder %s176, %s178
      %p182 = scmp.eq.s32.totalorder %s27, 0
      %p183 = por %p181, %p182
      %p184 = scmp.ne.s32.totalorder %s176, %s178
      %p185 = scmp.eq.s32.totalorder %s32, 1
      %p186 = por %p184, %p185
      %p187 = scmp.ne.s32.totalorder %s178, %s179
      %p188 = scmp.eq.s32.totalorder %s32, 0
      %p189 = por %p187, %p188
      %p190 = scmp.ne.s32.totalorder %s178, %s179
      %p191 = scmp.eq.s32.totalorder %s33, 1
      %p192 = por %p190, %p191
      %p194 = scmp.ne.s32.totalorder %s179, %s193
      %p195 = scmp.eq.s32.totalorder %s33, 0
      %p196 = por %p194, %p195
      %s198 = sadd.s32 %s197, 1
      %p201 = scmp.eq.s32.totalorder %s27, 1
      %p202 = scmp.ne.s32.totalorder %s197, %s199
      %p203 = scmp.eq.s32.totalorder %s27, 0
      %p204 = por %p202, %p203
      %p205 = scmp.ne.s32.totalorder %s197, %s199
      %p206 = scmp.eq.s32.totalorder %s32, 1
      %p207 = por %p205, %p206
      %p208 = scmp.ne.s32.totalorder %s199, %s200
      %p209 = scmp.eq.s32.totalorder %s32, 0
      %p210 = por %p208, %p209
      %p211 = scmp.ne.s32.totalorder %s199, %s200
      %p212 = scmp.eq.s32.totalorder %s33, 1
      %p213 = por %p211, %p212
      %p215 = scmp.ne.s32.totalorder %s200, %s214
      %p216 = scmp.eq.s32.totalorder %s33, 0
      %p217 = por %p215, %p216
      %s219 = sadd.s32 %s218, 1
      %p222 = scmp.eq.s32.totalorder %s27, 1
      %p223 = scmp.ne.s32.totalorder %s218, %s220
      %p224 = scmp.eq.s32.totalorder %s27, 0
      %p225 = por %p223, %p224
      %p226 = scmp.ne.s32.totalorder %s218, %s220
      %p227 = scmp.eq.s32.totalorder %s32, 1
      %p228 = por %p226, %p227
      %p229 = scmp.ne.s32.totalorder %s220, %s221
      %p230 = scmp.eq.s32.totalorder %s32, 0
      %p231 = por %p229, %p230
      %p232 = scmp.ne.s32.totalorder %s220, %s221
      %p233 = scmp.eq.s32.totalorder %s33, 1
      %p234 = por %p232, %p233
      %p236 = scmp.ne.s32.totalorder %s221, %s235
      %p237 = scmp.eq.s32.totalorder %s33, 0
      %p238 = por %p236, %p237
      %s239 = ssub.s32 %s27, %s34
      %p240 = scmp.eq.s32.totalorder %s239, 0
      %s242 = sadd.s32 %s241, 1
      %s243 = scalar_select %p240, %s241, %s242
      %p246 = pneg %p240
      %p247 = scmp.eq.s32.totalorder %s27, 1
      %p248 = por %p246, %p247
      %p249 = scmp.ne.s32.totalorder %s241, %s244
      %p250 = scmp.eq.s32.totalorder %s27, 0
      %p251 = por %p249, %p250
      %p252 = scmp.ne.s32.totalorder %s241, %s244
      %p253 = scmp.eq.s32.totalorder %s32, 1
      %p254 = por %p252, %p253
      %p255 = scmp.ne.s32.totalorder %s244, %s245
      %p256 = scmp.eq.s32.totalorder %s32, 0
      %p257 = por %p255, %p256
      %p258 = scmp.ne.s32.totalorder %s244, %s245
      %p259 = scmp.eq.s32.totalorder %s33, 1
      %p260 = por %p258, %p259
      %p262 = scmp.ne.s32.totalorder %s245, %s261
      %p263 = scmp.eq.s32.totalorder %s33, 0
      %p264 = por %p262, %p263
      %s265 = ssub.s32 %s27, %s34
      %p266 = scmp.eq.s32.totalorder %s265, 0
      %s268 = sadd.s32 %s267, 1
      %s269 = scalar_select %p266, %s267, %s268
      %p272 = pneg %p266
      %p273 = scmp.eq.s32.totalorder %s27, 1
      %p274 = por %p272, %p273
      %p275 = scmp.ne.s32.totalorder %s267, %s270
      %p276 = scmp.eq.s32.totalorder %s27, 0
      %p277 = por %p275, %p276
      %p278 = scmp.ne.s32.totalorder %s267, %s270
      %p279 = scmp.eq.s32.totalorder %s32, 1
      %p280 = por %p278, %p279
      %p281 = scmp.ne.s32.totalorder %s270, %s271
      %p282 = scmp.eq.s32.totalorder %s32, 0
      %p283 = por %p281, %p282
      %p284 = scmp.ne.s32.totalorder %s270, %s271
      %p285 = scmp.eq.s32.totalorder %s33, 1
      %p286 = por %p284, %p285
      %p288 = scmp.ne.s32.totalorder %s271, %s287
      %p289 = scmp.eq.s32.totalorder %s33, 0
      %p290 = por %p288, %p289
      %p291 = scmp.le.s32.totalorder 1, %s27
      %p292 = scmp.lt.s32.totalorder %s27, 3
      %p293 = pnand %p291, %p292
      %p294 = pneg %p293
      // Predicated region
      $region9: #{tpu_custom_call.1} parent=5 // pred_check
        _
      $region10: #{tpu_custom_call.1} parent=5 // pred_check_branch
        %296 = sbr.rel (%p293) target = $region12
      $region11: #{tpu_custom_call.1} parent=5 // pred_region
        %s297 = ssub.s32 %s27, 1
        // Predicated region
        $region13: #{tpu_custom_call.1} parent=11 // pred_check
          %p298 = pneg %p126
        $region14: #{tpu_custom_call.1} parent=11 // pred_check_branch
          %300 = sbr.rel (%p298) target = $region16
        $region15: #{tpu_custom_call.1} parent=11 // pred_region
          %s302 = ssub.s32 1024, 1024
          %303 = vsyncadd [#allocation4], %s302
          %s304 = sshll.u32 [#allocation3], 4
          %s305 = int_to_ptr.vmem [resolvable:$true] %s304
          %310 = dma.hbm_to_vmem [thread:$0]  %s3, 1024, %s305, [#allocation4], 64, 64, 4
        $region16: #{tpu_custom_call.1} parent=11 // pred_fallthru
          _
        // Predicated region
        $region17: #{tpu_custom_call.1} parent=11 // pred_check
          %p311 = pneg %p147
        $region18: #{tpu_custom_call.1} parent=11 // pred_check_branch
          %313 = sbr.rel (%p311) target = $region20
        $region19: #{tpu_custom_call.1} parent=11 // pred_region
          _
        $region20: #{tpu_custom_call.1} parent=11 // pred_fallthru
          _
        // Predicated region
        $region21: #{tpu_custom_call.1} parent=11 // pred_check
          %p314 = pneg %p168
        $region22: #{tpu_custom_call.1} parent=11 // pred_check_branch
          %316 = sbr.rel (%p314) target = $region24
        $region23: #{tpu_custom_call.1} parent=11 // pred_region
          %s318 = ssub.s32 3072, 3072
          %319 = vsyncadd [#allocation7], %s318
          %s320 = sshll.u32 [#allocation6], 4
          %s321 = int_to_ptr.vmem [resolvable:$true] %s320
          %326 = dma.hbm_to_vmem [thread:$0]  %s5, 3072, %s321, [#allocation7], 192, 192, 12
        $region24: #{tpu_custom_call.1} parent=11 // pred_fallthru
          _
        // Predicated region
        $region25: #{tpu_custom_call.1} parent=11 // pred_check
          %p327 = pneg %p189
        $region26: #{tpu_custom_call.1} parent=11 // pred_check_branch
          %329 = sbr.rel (%p327) target = $region28
        $region27: #{tpu_custom_call.1} parent=11 // pred_region
          _
        $region28: #{tpu_custom_call.1} parent=11 // pred_fallthru
          _
        // Predicated region
        $region29: #{tpu_custom_call.1} parent=11 // pred_check
          %p330 = pneg %p210
        $region30: #{tpu_custom_call.1} parent=11 // pred_check_branch
          %332 = sbr.rel (%p330) target = $region32
        $region31: #{tpu_custom_call.1} parent=11 // pred_region
          _
        $region32: #{tpu_custom_call.1} parent=11 // pred_fallthru
          _
        // Predicated region
        $region33: #{tpu_custom_call.1} parent=11 // pred_check
          %p333 = pneg %p231
        $region34: #{tpu_custom_call.1} parent=11 // pred_check_branch
          %335 = sbr.rel (%p333) target = $region36
        $region35: #{tpu_custom_call.1} parent=11 // pred_region
          _
        $region36: #{tpu_custom_call.1} parent=11 // pred_fallthru
          _
      $region12: #{tpu_custom_call.1} parent=5 // pred_fallthru
        _
      %p336 = scmp.lt.s32.totalorder %s27, 2
      // Predicated region
      $region37: #{tpu_custom_call.1} parent=5 // pred_check
        %p337 = pneg %p336
      $region38: #{tpu_custom_call.1} parent=5 // pred_check_branch
        %339 = sbr.rel (%p337) target = $region40
      $region39: #{tpu_custom_call.1} parent=5 // pred_region
        // Predicated region
        $region41: #{tpu_custom_call.1} parent=39 // pred_check
          %p340 = pneg %p47
        $region42: #{tpu_custom_call.1} parent=39 // pred_check_branch
          %342 = sbr.rel (%p340) target = $region44
        $region43: #{tpu_custom_call.1} parent=39 // pred_region
          %s343 = smul.u32 2, %s27
          %p344 = scmp.lt.s32.totalorder %s343, 3
          %s345 = scalar_select %p344, %s343, 3
          %s346 = smul.addr %s345, 4
          %s347 = scalar_lea.vmem %s0, %s346
          %s348 = smul.u32 2, %s27
        $region44: #{tpu_custom_call.1} parent=39 // pred_fallthru
          _
        // Predicated region
        $region45: #{tpu_custom_call.1} parent=39 // pred_check
          %p349 = pneg %p73
        $region46: #{tpu_custom_call.1} parent=39 // pred_check_branch
          %351 = sbr.rel (%p349) target = $region48
        $region47: #{tpu_custom_call.1} parent=39 // pred_region
          %p352 = scmp.lt.s32.totalorder %s27, 1
          %s353 = scalar_select %p352, %s27, 1
          %s354 = smul.addr %s353, 2
          %s355 = scalar_lea.vmem %s1, %s354
        $region48: #{tpu_custom_call.1} parent=39 // pred_fallthru
          _
        // Predicated region
        $region49: #{tpu_custom_call.1} parent=39 // pred_check
          %p356 = pneg %p99
        $region50: #{tpu_custom_call.1} parent=39 // pred_check_branch
          %358 = sbr.rel (%p356) target = $region52
        $region51: #{tpu_custom_call.1} parent=39 // pred_region
          %s359 = smul.u32 2, %s27
          %p360 = scmp.lt.s32.totalorder %s359, 3
          %s361 = scalar_select %p360, %s359, 3
          %s362 = smul.addr %s361, 4
          %s363 = scalar_lea.vmem %s2, %s362
          %s364 = smul.u32 2, %s27
        $region52: #{tpu_custom_call.1} parent=39 // pred_fallthru
          _
      $region40: #{tpu_custom_call.1} parent=5 // pred_fallthru
        _
      %p365 = scmp.le.s32.totalorder 1, %s27
      %p366 = scmp.lt.s32.totalorder %s27, 3
      %p367 = pnand %p365, %p366
      %p368 = pneg %p367
      // Predicated region
      $region53: #{tpu_custom_call.1} parent=5 // pred_check
        _
      $region54: #{tpu_custom_call.1} parent=5 // pred_check_branch
        %370 = sbr.rel (%p367) target = $region56
      $region55: #{tpu_custom_call.1} parent=5 // pred_region
        %s371 = ssub.s32 %s27, 1
        // Predicated region
        $region57: #{tpu_custom_call.1} parent=55 // pred_check
          %p372 = pneg %p126
        $region58: #{tpu_custom_call.1} parent=55 // pred_check_branch
          %374 = sbr.rel (%p372) target = $region60
        $region59: #{tpu_custom_call.1} parent=55 // pred_region
          %375 = dma.done [#allocation4], 1024
        $region60: #{tpu_custom_call.1} parent=55 // pred_fallthru
          _
        // Predicated region
        $region61: #{tpu_custom_call.1} parent=55 // pred_check
          %p376 = pneg %p168
        $region62: #{tpu_custom_call.1} parent=55 // pred_check_branch
          %378 = sbr.rel (%p376) target = $region64
        $region63: #{tpu_custom_call.1} parent=55 // pred_region
          %379 = dma.done [#allocation7], 3072
        $region64: #{tpu_custom_call.1} parent=55 // pred_fallthru
          _
        %s380 = smul.u32 2, %s32
        %p381 = scmp.lt.s32.totalorder %s380, 3
        %s382 = scalar_select %p381, %s380, 3
        %s383 = smul.addr %s382, 4
        %s384 = scalar_lea.vmem %s0, %s383
        %p385 = pneg %p53
        %p386 = pneg %p50
        %p387 = scmp.lt.s32.totalorder %s32, 1
        %s388 = scalar_select %p387, %s32, 1
        %s389 = smul.addr %s388, 2
        %s390 = scalar_lea.vmem %s1, %s389
        %p391 = pneg %p79
        %p392 = pneg %p76
        %s393 = smul.u32 2, %s32
        %p394 = scmp.lt.s32.totalorder %s393, 3
        %s395 = scalar_select %p394, %s393, 3
        %s396 = smul.addr %s395, 4
        %s397 = scalar_lea.vmem %s2, %s396
        %p398 = pneg %p105
        %p399 = pneg %p102
        %p400 = pneg %p126
        %p401 = pneg %p123
        %p402 = pneg %p147
        %p403 = pneg %p144
        %p404 = pneg %p168
        %p405 = pneg %p165
        %p406 = pneg %p189
        %p407 = pneg %p186
        %p408 = pneg %p210
        %p409 = pneg %p207
        %p410 = pneg %p231
        %p411 = pneg %p228
        %p412 = pneg %p257
        %p413 = pneg %p254
        %s414 = sand.u32 %s244, 1
        %s415 = scalar_lea.sflag [#allocation5], %s414
        %s416 = sand.u32 %s244, 1
        %s417 = smul.addr %s416, 16
        %s418 = scalar_lea.vmem [#allocation8], %s417
        %p419 = pneg %p283
        %p420 = pneg %p280
        %s421 = sand.u32 %s270, 1
        %s422 = scalar_lea.sflag [#allocation10], %s421
        %s423 = sand.u32 %s270, 1
        %s424 = smul.addr %s423, 2
        %s425 = scalar_lea.vmem [#allocation9], %s424
        %s426 = smul.u32 2, %s32
        %p427 = scmp.lt.s32.totalorder %s426, 3
        %s428 = scalar_select %p427, %s426, 3
        %s429 = smul.addr %s428, 4
        %s430 = scalar_lea.vmem %s0, %s429
        %s431 = smul.u32 2, %s32
        %p432 = scmp.lt.s32.totalorder %s32, 1
        %s433 = scalar_select %p432, %s32, 1
        %s434 = smul.addr %s433, 2
        %s435 = scalar_lea.vmem %s1, %s434
        %s436 = smul.u32 2, %s32
        %p437 = scmp.lt.s32.totalorder %s436, 3
        %s438 = scalar_select %p437, %s436, 3
        %s439 = smul.addr %s438, 4
        %s440 = scalar_lea.vmem %s2, %s439
        %s441 = smul.u32 2, %s32
        %s442 = smul.u32 2, %s32
        %v444 = vld [vmem:[%s430] sm:$0xf]
        %v445 = vld [vmem:[%s430 + $0x4] sm:$0xf]
        %v446 = vld [vmem:[#allocation3] sm:$0xf]
        %v447 = vld [vmem:[#allocation3 + $0x4] sm:$0xf]
        %v448 = vld [vmem:[#allocation3 + $0x8] sm:$0xf]
        %v449 = vld [vmem:[#allocation3 + $0xc] sm:$0xf]
        %v450 = vld [vmem:[#allocation3 + $0x10] sm:$0xf]
        %v451 = vld [vmem:[#allocation3 + $0x14] sm:$0xf]
        %v452 = vld [vmem:[#allocation3 + $0x18] sm:$0xf]
        %v453 = vld [vmem:[#allocation3 + $0x1c] sm:$0xf]
        %v454 = vld [vmem:[#allocation3 + $0x20] sm:$0xf]
        %v455 = vld [vmem:[#allocation3 + $0x24] sm:$0xf]
        %v456 = vld [vmem:[#allocation3 + $0x28] sm:$0xf]
        %v457 = vld [vmem:[#allocation3 + $0x2c] sm:$0xf]
        %v458 = vld [vmem:[#allocation3 + $0x30] sm:$0xf]
        %v459 = vld [vmem:[#allocation3 + $0x34] sm:$0xf]
        %v460 = vld [vmem:[#allocation3 + $0x38] sm:$0xf]
        %v461 = vld [vmem:[#allocation3 + $0x3c] sm:$0xf]
        %v462 = vld [vmem:[%s4] sm:$0x1]
        %v464 = vlaneseq
        %v465 = vshrl.u32 %v464, 7
        %v466 = vsub.s32 0, %v465
        %v467 = vrot.slane %v462, %v466
        %v471 = vunpack.c.l.b16 %v444
        %v472 = vunpack.c.l.b16 %v445
        %v473 = vpack.c.b16 %v472, %v471
        %v491 = vunpack.c.l.b16 %v446
        %v492 = vunpack.c.l.b16 %v447
        %v493 = vunpack.c.l.b16 %v448
        %v494 = vunpack.c.l.b16 %v449
        %v495 = vunpack.c.l.b16 %v450
        %v496 = vunpack.c.l.b16 %v451
        %v497 = vunpack.c.l.b16 %v452
        %v498 = vunpack.c.l.b16 %v453
        %v499 = vunpack.c.l.b16 %v454
        %v500 = vunpack.c.l.b16 %v455
        %v501 = vunpack.c.l.b16 %v456
        %v502 = vunpack.c.l.b16 %v457
        %v503 = vunpack.c.l.b16 %v458
        %v504 = vunpack.c.l.b16 %v459
        %v505 = vunpack.c.l.b16 %v460
        %v506 = vunpack.c.l.b16 %v461
        %v507 = vpack.c.b16 %v492, %v491
        %v508 = vpack.c.b16 %v494, %v493
        %v509 = vpack.c.b16 %v496, %v495
        %v510 = vpack.c.b16 %v498, %v497
        %v511 = vpack.c.b16 %v500, %v499
        %v512 = vpack.c.b16 %v502, %v501
        %v513 = vpack.c.b16 %v504, %v503
        %v514 = vpack.c.b16 %v506, %v505
        %523 = vmatprep.subr.bf16.mxu0 0
        %524 = vmatpush1.bf16.msra.mxu0 %v514
        %525 = vmatprep.subr.bf16.mxu0 0
        %526 = vmatpush1.bf16.msra.mxu0 %v513
        %527 = vmatprep.subr.bf16.mxu0 0
        %528 = vmatpush1.bf16.msra.mxu0 %v512
        %529 = vmatprep.subr.bf16.mxu0 0
        %530 = vmatpush1.bf16.msra.mxu0 %v511
        %531 = vmatprep.subr.bf16.mxu0 0
        %532 = vmatpush1.bf16.msra.mxu0 %v510
        %533 = vmatprep.subr.bf16.mxu0 0
        %534 = vmatpush1.bf16.msra.mxu0 %v509
        %535 = vmatprep.subr.bf16.mxu0 0
        %536 = vmatpush1.bf16.msra.mxu0 %v508
        %537 = vmatprep.subr.bf16.mxu0 0
        %538 = vmatpush1.bf16.msra.mxu0 %v507
        %539 = vmatprep.subr.bf16.mxu0 0
        %540 = vmatpush2.bf16.msra.mxu0 0
        %541 = vmatprep.subr.bf16.mxu0 0
        %542 = vmatpush2.bf16.msra.mxu0 0
        %543 = vmatprep.subr.bf16.mxu0 0
        %544 = vmatpush2.bf16.msra.mxu0 0
        %545 = vmatprep.subr.bf16.mxu0 0
        %546 = vmatpush2.bf16.msra.mxu0 0
        %547 = vmatprep.subr.bf16.mxu0 0
        %548 = vmatpush2.bf16.msra.mxu0 0
        %549 = vmatprep.subr.bf16.mxu0 0
        %550 = vmatpush2.bf16.msra.mxu0 0
        %551 = vmatprep.subr.bf16.mxu0 0
        %552 = vmatpush2.bf16.msra.mxu0 0
        %553 = vmatprep.subr.bf16.mxu0 0
        %554 = vmatpush2.bf16.msra.mxu0 0
        %555 = vmatprep.mubr.bf16.mxu0 0
        %556 = vmatmul.mubr.bf16.gmra.mxu0 %v473
        %v557 = vpop.f32.mrf.mxu0
        %v558 = vadd.f32 %v467, %v557
        %v559 = vpop.f32.mrf.mxu0
        %v560 = vpop.f32.mrf.mxu0
        %v561 = vadd.f32 %v467, %v560
        %v562 = vpop.f32.mrf.mxu0
        %563 = vdwg.mxu0
        %v564 = vpack.c.bf16 %v561, %v558
        %v565 = vld [vmem:[#allocation6] sm:$0xff]
        %v566 = vld [vmem:[#allocation6 + $0x8] sm:$0xf]
        %v567 = vld [vmem:[#allocation6 + $0xc] sm:$0xff]
        %v568 = vld [vmem:[#allocation6 + $0x14] sm:$0xf]
        %v569 = vld [vmem:[#allocation6 + $0x18] sm:$0xff]
        %v570 = vld [vmem:[#allocation6 + $0x20] sm:$0xf]
        %v571 = vld [vmem:[#allocation6 + $0x24] sm:$0xff]
        %v572 = vld [vmem:[#allocation6 + $0x2c] sm:$0xf]
        %v573 = vld [vmem:[#allocation6 + $0x30] sm:$0xff]
        %v574 = vld [vmem:[#allocation6 + $0x38] sm:$0xf]
        %v575 = vld [vmem:[#allocation6 + $0x3c] sm:$0xff]
        %v576 = vld [vmem:[#allocation6 + $0x44] sm:$0xf]
        %v577 = vld [vmem:[#allocation6 + $0x48] sm:$0xff]
        %v578 = vld [vmem:[#allocation6 + $0x50] sm:$0xf]
        %v579 = vld [vmem:[#allocation6 + $0x54] sm:$0xff]
        %v580 = vld [vmem:[#allocation6 + $0x5c] sm:$0xf]
        %v581 = vld [vmem:[#allocation6 + $0x60] sm:$0xff]
        %v582 = vld [vmem:[#allocation6 + $0x68] sm:$0xf]
        %v583 = vld [vmem:[#allocation6 + $0x6c] sm:$0xff]
        %v584 = vld [vmem:[#allocation6 + $0x74] sm:$0xf]
        %v585 = vld [vmem:[#allocation6 + $0x78] sm:$0xff]
        %v586 = vld [vmem:[#allocation6 + $0x80] sm:$0xf]
        %v587 = vld [vmem:[#allocation6 + $0x84] sm:$0xff]
        %v588 = vld [vmem:[#allocation6 + $0x8c] sm:$0xf]
        %v589 = vld [vmem:[#allocation6 + $0x90] sm:$0xff]
        %v590 = vld [vmem:[#allocation6 + $0x98] sm:$0xf]
        %v591 = vld [vmem:[#allocation6 + $0x9c] sm:$0xff]
        %v592 = vld [vmem:[#allocation6 + $0xa4] sm:$0xf]
        %v593 = vld [vmem:[#allocation6 + $0xa8] sm:$0xff]
        %v594 = vld [vmem:[#allocation6 + $0xb0] sm:$0xf]
        %v595 = vld [vmem:[#allocation6 + $0xb4] sm:$0xff]
        %v596 = vld [vmem:[#allocation6 + $0xbc] sm:$0xf]
        %v597 = vld [vmem:[%s6] sm:$0x7]
        %v599 = vlaneseq
        %v600 = vshrl.u32 %v599, 7
        %v601 = vsub.s32 0, %v600
        %v602 = vrot.slane %v597, %v601
        %v603 = vlaneseq
        %v604 = vshrl.u32 %v603, 7
        %v605 = vsub.s32 1, %v604
        %v606 = vrot.slane %v597, %v605
        %v607 = vlaneseq
        %v608 = vshrl.u32 %v607, 7
        %v609 = vsub.s32 2, %v608
        %v610 = vrot.slane %v597, %v609
        %v646 = vunpack.c.l.b16 %v565
        %v647 = vunpack.c.h.b16 %v565
        %v648 = vunpack.c.l.b16 %v566
        %v649 = vunpack.c.l.b16 %v567
        %v650 = vunpack.c.h.b16 %v567
        %v651 = vunpack.c.l.b16 %v568
        %v652 = vunpack.c.l.b16 %v569
        %v653 = vunpack.c.h.b16 %v569
        %v654 = vunpack.c.l.b16 %v570
        %v655 = vunpack.c.l.b16 %v571
        %v656 = vunpack.c.h.b16 %v571
        %v657 = vunpack.c.l.b16 %v572
        %v658 = vunpack.c.l.b16 %v573
        %v659 = vunpack.c.h.b16 %v573
        %v660 = vunpack.c.l.b16 %v574
        %v661 = vunpack.c.l.b16 %v575
        %v662 = vunpack.c.h.b16 %v575
        %v663 = vunpack.c.l.b16 %v576
        %v664 = vunpack.c.l.b16 %v577
        %v665 = vunpack.c.h.b16 %v577
        %v666 = vunpack.c.l.b16 %v578
        %v667 = vunpack.c.l.b16 %v579
        %v668 = vunpack.c.h.b16 %v579
        %v669 = vunpack.c.l.b16 %v580
        %v670 = vunpack.c.l.b16 %v581
        %v671 = vunpack.c.h.b16 %v581
        %v672 = vunpack.c.l.b16 %v582
        %v673 = vunpack.c.l.b16 %v583
        %v674 = vunpack.c.h.b16 %v583
        %v675 = vunpack.c.l.b16 %v584
        %v676 = vunpack.c.l.b16 %v585
        %v677 = vunpack.c.h.b16 %v585
        %v678 = vunpack.c.l.b16 %v586
        %v679 = vunpack.c.l.b16 %v587
        %v680 = vunpack.c.h.b16 %v587
        %v681 = vunpack.c.l.b16 %v588
        %v682 = vunpack.c.l.b16 %v589
        %v683 = vunpack.c.h.b16 %v589
        %v684 = vunpack.c.l.b16 %v590
        %v685 = vunpack.c.l.b16 %v591
        %v686 = vunpack.c.h.b16 %v591
        %v687 = vunpack.c.l.b16 %v592
        %v688 = vunpack.c.l.b16 %v593
        %v689 = vunpack.c.h.b16 %v593
        %v690 = vunpack.c.l.b16 %v594
        %v691 = vunpack.c.l.b16 %v595
        %v692 = vunpack.c.h.b16 %v595
        %v693 = vunpack.c.l.b16 %v596
        %v694 = vpack.c.b16 %v649, %v646
        %v695 = vpack.c.b16 %v650, %v647
        %v696 = vpack.c.b16 %v651, %v648
        %v697 = vpack.c.b16 %v655, %v652
        %v698 = vpack.c.b16 %v656, %v653
        %v699 = vpack.c.b16 %v657, %v654
        %v700 = vpack.c.b16 %v661, %v658
        %v701 = vpack.c.b16 %v662, %v659
        %v702 = vpack.c.b16 %v663, %v660
        %v703 = vpack.c.b16 %v667, %v664
        %v704 = vpack.c.b16 %v668, %v665
        %v705 = vpack.c.b16 %v669, %v666
        %v706 = vpack.c.b16 %v673, %v670
        %v707 = vpack.c.b16 %v674, %v671
        %v708 = vpack.c.b16 %v675, %v672
        %v709 = vpack.c.b16 %v679, %v676
        %v710 = vpack.c.b16 %v680, %v677
        %v711 = vpack.c.b16 %v681, %v678
        %v712 = vpack.c.b16 %v685, %v682
        %v713 = vpack.c.b16 %v686, %v683
        %v714 = vpack.c.b16 %v687, %v684
        %v715 = vpack.c.b16 %v691, %v688
        %v716 = vpack.c.b16 %v692, %v689
        %v717 = vpack.c.b16 %v693, %v690
        %742 = vmatprep.subr.bf16.mxu0 %v716
        %743 = vmatpush1.bf16.msra.mxu0 %v715
        %744 = vmatprep.subr.bf16.mxu0 %v713
        %745 = vmatpush1.bf16.msra.mxu0 %v712
        %746 = vmatprep.subr.bf16.mxu0 %v710
        %747 = vmatpush1.bf16.msra.mxu0 %v709
        %748 = vmatprep.subr.bf16.mxu0 %v707
        %749 = vmatpush1.bf16.msra.mxu0 %v706
        %750 = vmatprep.subr.bf16.mxu0 %v704
        %751 = vmatpush1.bf16.msra.mxu0 %v703
        %752 = vmatprep.subr.bf16.mxu0 %v701
        %753 = vmatpush1.bf16.msra.mxu0 %v700
        %754 = vmatprep.subr.bf16.mxu0 %v698
        %755 = vmatpush1.bf16.msra.mxu0 %v697
        %756 = vmatprep.subr.bf16.mxu0 %v695
        %757 = vmatpush1.bf16.msra.mxu0 %v694
        %758 = vmatprep.subr.bf16.mxu0 0
        %759 = vmatpush2.bf16.msra.mxu0 0
        %760 = vmatprep.subr.bf16.mxu0 0
        %761 = vmatpush2.bf16.msra.mxu0 0
        %762 = vmatprep.subr.bf16.mxu0 0
        %763 = vmatpush2.bf16.msra.mxu0 0
        %764 = vmatprep.subr.bf16.mxu0 0
        %765 = vmatpush2.bf16.msra.mxu0 0
        %766 = vmatprep.subr.bf16.mxu0 0
        %767 = vmatpush2.bf16.msra.mxu0 0
        %768 = vmatprep.subr.bf16.mxu0 0
        %769 = vmatpush2.bf16.msra.mxu0 0
        %770 = vmatprep.subr.bf16.mxu0 0
        %771 = vmatpush2.bf16.msra.mxu0 0
        %772 = vmatprep.subr.bf16.mxu0 0
        %773 = vmatpush2.bf16.msra.mxu0 0
        %774 = vmatprep.mubr.bf16.mxu0 0
        %775 = vmatmul.mubr.bf16.gmra.mxu0 %v564
        %v776 = vpop.f32.mrf.mxu0
        %v777 = vadd.f32 %v602, %v776
        %v778 = vpop.f32.mrf.mxu0
        %v779 = vadd.f32 %v606, %v778
        %v780 = vpop.f32.mrf.mxu0
        %v781 = vadd.f32 %v602, %v780
        %v782 = vpop.f32.mrf.mxu0
        %v783 = vadd.f32 %v606, %v782
        %784 = vdwg.mxu0
        %785 = vmatprep.subr.bf16.mxu0 0
        %786 = vmatpush1.bf16.msra.mxu0 %v717
        %787 = vmatprep.subr.bf16.mxu0 0
        %788 = vmatpush1.bf16.msra.mxu0 %v714
        %789 = vmatprep.subr.bf16.mxu0 0
        %790 = vmatpush1.bf16.msra.mxu0 %v711
        %791 = vmatprep.subr.bf16.mxu0 0
        %792 = vmatpush1.bf16.msra.mxu0 %v708
        %793 = vmatprep.subr.bf16.mxu0 0
        %794 = vmatpush1.bf16.msra.mxu0 %v705
        %795 = vmatprep.subr.bf16.mxu0 0
        %796 = vmatpush1.bf16.msra.mxu0 %v702
        %797 = vmatprep.subr.bf16.mxu0 0
        %798 = vmatpush1.bf16.msra.mxu0 %v699
        %799 = vmatprep.subr.bf16.mxu0 0
        %800 = vmatpush1.bf16.msra.mxu0 %v696
        %801 = vmatprep.subr.bf16.mxu0 0
        %802 = vmatpush2.bf16.msra.mxu0 0
        %803 = vmatprep.subr.bf16.mxu0 0
        %804 = vmatpush2.bf16.msra.mxu0 0
        %805 = vmatprep.subr.bf16.mxu0 0
        %806 = vmatpush2.bf16.msra.mxu0 0
        %807 = vmatprep.subr.bf16.mxu0 0
        %808 = vmatpush2.bf16.msra.mxu0 0
        %809 = vmatprep.subr.bf16.mxu0 0
        %810 = vmatpush2.bf16.msra.mxu0 0
        %811 = vmatprep.subr.bf16.mxu0 0
        %812 = vmatpush2.bf16.msra.mxu0 0
        %813 = vmatprep.subr.bf16.mxu0 0
        %814 = vmatpush2.bf16.msra.mxu0 0
        %815 = vmatprep.subr.bf16.mxu0 0
        %816 = vmatpush2.bf16.msra.mxu0 0
        %817 = vmatprep.mubr.bf16.mxu0 0
        %818 = vmatmul.mubr.bf16.gmra.mxu0 %v564
        %v819 = vpop.f32.mrf.mxu0
        %v820 = vadd.f32 %v610, %v819
        %v821 = vpop.f32.mrf.mxu0
        %v822 = vpop.f32.mrf.mxu0
        %v823 = vadd.f32 %v610, %v822
        %v824 = vpop.f32.mrf.mxu0
        %825 = vdwg.mxu0
        %v826 = vmax.f32 %v820, 0.0
        %v827 = vmax.f32 %v823, 0.0
        %v828 = vld [vmem:[%s7] sm:$0x1]
        %v830 = vlaneseq
        %v831 = vshrl.u32 %v830, 7
        %v832 = vsub.s32 0, %v831
        %v833 = vrot.slane %v828, %v832
        %v835 = vmul.f32 %v826, %v833
        %v836 = vmul.f32 %v827, %v833
        %837 = vadd.xlane.f32.xlu0 %v835
        %v838 = vpop.xlane.xlu0 %837
        %839 = vadd.xlane.f32.xlu0 %v836
        %v840 = vpop.xlane.xlu0 %839
        %v841 = vld [vmem:[#allocation2] sm:$0x1]
        %v843 = vlaneseq
        %v844 = vshrl.u32 %v843, 7
        %v845 = vsub.s32 0, %v844
        %v846 = vrot.slane %v841, %v845
        %v848 = vadd.f32 %v838, %v846
        %v849 = vadd.f32 %v840, %v846
        %851 = vset.pattern.permute.xlu0 0
        %852 = vperm.xlu0 %851, %v848
        %v853 = vpop.permute.xlu0 %852
        %856 = vset.pattern.permute.xlu0 0
        %857 = vperm.xlu0 %856, %v849
        %v858 = vpop.permute.xlu0 %857
        %v860 = vadd.f32 %v853, %v779
        %v861 = vadd.f32 %v858, %v783
        %862 = vadd.xlane.f32.xlu0 %v779
        %v863 = vpop.xlane.xlu0 %862
        %864 = vadd.xlane.f32.xlu0 %v783
        %v865 = vpop.xlane.xlu0 %864
        %v866 = vmul.f32 %v863, 0.03125
        %v867 = vmul.f32 %v865, 0.03125
        %v868 = vsub.f32 %v860, %v866
        %v869 = vsub.f32 %v861, %v867
        %v870 = vld [vmem:[%s435] sm:$0x3]
        %v871 = vlaneseq
        %v872 = vshrl.u32 %v871, 7
        %v873 = vsub.s32 0, %v872
        %v874 = vrot.slane %v870, %v873
        %876 = vbcast.lane.b32.xlu0 %v874, 256
        %v877 = vpop.permute.xlu0 %876
        %v878 = vlaneseq
        %v879 = vshrl.u32 %v878, 7
        %v880 = vsub.s32 1, %v879
        %v881 = vrot.slane %v870, %v880
        %883 = vbcast.lane.b32.xlu0 %v881, 256
        %v884 = vpop.permute.xlu0 %883
        %vm885 = vcmp.gt.f32.partialorder %v877, 0.5
        %vm886 = vcmp.gt.f32.partialorder %v884, 0.5
        %v887 = vsel %vm885, 1, 0
        %v888 = vsel %vm886, 1, 0
        %vm889 = vcmp.eq.s32.totalorder %v887, 1
        %vm890 = vcmp.eq.s32.totalorder %v888, 1
        %v891 = vsel %vm889, %v777, 0.0
        %v892 = vsel %vm890, %v781, 0.0
        %v893 = vsel %vm889, %v868, -1e+12
        %v894 = vsel %vm890, %v869, -1e+12
        %v895 = vrot.slane %v893, 4
        %v896 = vmax.f32 %v893, %v895
        %v897 = vrot.slane %v896, 2
        %v898 = vmax.f32 %v896, %v897
        %v899 = vrot.slane %v898, 1
        %v900 = vmax.f32 %v898, %v899
        %v901 = vrot.slane %v894, 4
        %v902 = vmax.f32 %v894, %v901
        %v903 = vrot.slane %v902, 2
        %v904 = vmax.f32 %v902, %v903
        %v905 = vrot.slane %v904, 1
        %v906 = vmax.f32 %v904, %v905
        %v907 = vsub.f32 %v893, %v900
        %v908 = vsub.f32 %v894, %v906
        %v909 = vmul.f32 %v907, 1.442695
        %v910 = vpow.pop %v909
        %v911 = vmul.f32 %v908, 1.442695
        %v912 = vpow.pop %v911
        %v913 = vrot.slane %v910, 4
        %v914 = vadd.f32 %v910, %v913
        %v915 = vrot.slane %v914, 2
        %v916 = vadd.f32 %v914, %v915
        %v917 = vrot.slane %v916, 1
        %v918 = vadd.f32 %v916, %v917
        %v919 = vrot.slane %v912, 4
        %v920 = vadd.f32 %v912, %v919
        %v921 = vrot.slane %v920, 2
        %v922 = vadd.f32 %v920, %v921
        %v923 = vrot.slane %v922, 1
        %v924 = vadd.f32 %v922, %v923
        %v925 = vrcp.pop %v918
        %v926 = vrcp.pop %v924
        %v927 = vmul.f32 %v910, %v891
        %v928 = vmul.f32 %v912, %v892
        %v929 = vrot.slane %v927, 4
        %v930 = vadd.f32 %v927, %v929
        %v931 = vrot.slane %v930, 2
        %v932 = vadd.f32 %v930, %v931
        %v933 = vrot.slane %v932, 1
        %v934 = vadd.f32 %v932, %v933
        %v935 = vrot.slane %v928, 4
        %v936 = vadd.f32 %v928, %v935
        %v937 = vrot.slane %v936, 2
        %v938 = vadd.f32 %v936, %v937
        %v939 = vrot.slane %v938, 1
        %v940 = vadd.f32 %v938, %v939
        %v941 = vmul.f32 %v934, %v925
        %v942 = vmul.f32 %v940, %v926
        %vm945 = vcmask 1041409
        %v946 = vsel %vm945, %v942, %v941
        %948 = vst [vmem:[%s425] sm:$0x3] %v946
        %v949 = vsub.f32 10.0, %v900
        %v950 = vsub.f32 10.0, %v906
        %v951 = vmin.f32 %v949, 80.0
        %v952 = vmin.f32 %v950, 80.0
        %v953 = vmul.f32 %v951, 1.442695
        %v954 = vpow.pop %v953
        %v955 = vmul.f32 %v952, 1.442695
        %v956 = vpow.pop %v955
        %v957 = vmin.f32 %v910, %v954
        %v958 = vmin.f32 %v912, %v956
        %v959 = vmul.f32 %v957, %v891
        %v960 = vmul.f32 %v958, %v892
        %v961 = vpack.c.bf16 %v960, %v959
        %v962 = vpack.c.bf16 %v958, %v957
        %v963 = vld [vmem:[%s440] sm:$0xf]
        %v964 = vld [vmem:[%s440 + $0x4] sm:$0xf]
        %v967 = vunpack.c.l.b16 %v963
        %v968 = vunpack.c.l.b16 %v964
        %v969 = vpack.c.b16 %v968, %v967
        %vm970 = vcmask 130048
        %v972 = vsel %vm970, %v969, 0
        %974 = vmatprep.subr.bf16.mxu0 0
        %975 = vmatpush1.bf16.msra.mxu0 0
        %976 = vmatprep.subr.bf16.mxu0 0
        %977 = vmatpush1.bf16.msra.mxu0 0
        %978 = vmatprep.subr.bf16.mxu0 0
        %979 = vmatpush1.bf16.msra.mxu0 0
        %980 = vmatprep.subr.bf16.mxu0 0
        %981 = vmatpush1.bf16.msra.mxu0 0
        %982 = vmatprep.subr.bf16.mxu0 0
        %983 = vmatpush1.bf16.msra.mxu0 0
        %984 = vmatprep.subr.bf16.mxu0 0
        %985 = vmatpush1.bf16.msra.mxu0 0
        %986 = vmatprep.subr.bf16.mxu0 0
        %987 = vmatpush1.bf16.msra.mxu0 0
        %988 = vmatprep.subr.bf16.mxu0 0
        %989 = vmatpush1.bf16.msra.mxu0 %v961
        %990 = vmatprep.subr.bf16.mxu0 0
        %991 = vmatpush2.bf16.msra.mxu0 0
        %992 = vmatprep.subr.bf16.mxu0 0
        %993 = vmatpush2.bf16.msra.mxu0 0
        %994 = vmatprep.subr.bf16.mxu0 0
        %995 = vmatpush2.bf16.msra.mxu0 0
        %996 = vmatprep.subr.bf16.mxu0 0
        %997 = vmatpush2.bf16.msra.mxu0 0
        %998 = vmatprep.subr.bf16.mxu0 0
        %999 = vmatpush2.bf16.msra.mxu0 0
        %1000 = vmatprep.subr.bf16.mxu0 0
        %1001 = vmatpush2.bf16.msra.mxu0 0
        %1002 = vmatprep.subr.bf16.mxu0 0
        %1003 = vmatpush2.bf16.msra.mxu0 0
        %1004 = vmatprep.subr.bf16.mxu0 0
        %1005 = vmatpush2.bf16.msra.mxu0 0
        %1006 = vmatprep.mubr.bf16.mxu0 0
        %1007 = vmatmul.mubr.bf16.gmra.mxu0 %v972
        %v1008 = vpop.f32.mrf.mxu0
        %v1009 = vadd.f32 0.0, %v1008
        %v1010 = vpop.f32.mrf.mxu0
        %v1011 = vpop.f32.mrf.mxu0
        %v1012 = vadd.f32 0.0, %v1011
        %v1013 = vpop.f32.mrf.mxu0
        %1014 = vdwg.mxu0
        %1015 = vmatprep.subr.bf16.mxu0 0
        %1016 = vmatpush1.bf16.msra.mxu0 0
        %1017 = vmatprep.subr.bf16.mxu0 0
        %1018 = vmatpush1.bf16.msra.mxu0 0
        %1019 = vmatprep.subr.bf16.mxu0 0
        %1020 = vmatpush1.bf16.msra.mxu0 0
        %1021 = vmatprep.subr.bf16.mxu0 0
        %1022 = vmatpush1.bf16.msra.mxu0 0
        %1023 = vmatprep.subr.bf16.mxu0 0
        %1024 = vmatpush1.bf16.msra.mxu0 0
        %1025 = vmatprep.subr.bf16.mxu0 0
        %1026 = vmatpush1.bf16.msra.mxu0 0
        %1027 = vmatprep.subr.bf16.mxu0 0
        %1028 = vmatpush1.bf16.msra.mxu0 0
        %1029 = vmatprep.subr.bf16.mxu0 0
        %1030 = vmatpush1.bf16.msra.mxu0 %v962
        %1031 = vmatprep.subr.bf16.mxu0 0
        %1032 = vmatpush2.bf16.msra.mxu0 0
        %1033 = vmatprep.subr.bf16.mxu0 0
        %1034 = vmatpush2.bf16.msra.mxu0 0
        %1035 = vmatprep.subr.bf16.mxu0 0
        %1036 = vmatpush2.bf16.msra.mxu0 0
        %1037 = vmatprep.subr.bf16.mxu0 0
        %1038 = vmatpush2.bf16.msra.mxu0 0
        %1039 = vmatprep.subr.bf16.mxu0 0
        %1040 = vmatpush2.bf16.msra.mxu0 0
        %1041 = vmatprep.subr.bf16.mxu0 0
        %1042 = vmatpush2.bf16.msra.mxu0 0
        %1043 = vmatprep.subr.bf16.mxu0 0
        %1044 = vmatpush2.bf16.msra.mxu0 0
        %1045 = vmatprep.subr.bf16.mxu0 0
        %1046 = vmatpush2.bf16.msra.mxu0 0
        %1047 = vmatprep.mubr.bf16.mxu0 0
        %1048 = vmatmul.mubr.bf16.gmra.mxu0 %v972
        %v1049 = vpop.f32.mrf.mxu0
        %v1050 = vadd.f32 1e-12, %v1049
        %v1051 = vpop.f32.mrf.mxu0
        %v1052 = vpop.f32.mrf.mxu0
        %v1053 = vadd.f32 1e-12, %v1052
        %v1054 = vpop.f32.mrf.mxu0
        %1055 = vdwg.mxu0
        %v1056 = vrcp.pop %v1050
        %v1057 = vrcp.pop %v1053
        %v1058 = vmul.f32 %v1009, %v1056
        %v1059 = vmul.f32 %v1012, %v1057
        %1060 = vst [vmem:[%s418] sm:$0xff] %v1058
        %1061 = vst [vmem:[%s418 + $0x8] sm:$0xff] %v1059
        %s1062 = sand.u32 %s244, 1
        %s1063 = scalar_lea.sflag [#allocation5], %s1062
        %s1064 = sand.u32 %s244, 1
        %s1065 = smul.addr %s1064, 16
        %s1066 = scalar_lea.vmem [#allocation8], %s1065
        %s1067 = sand.u32 %s270, 1
        %s1068 = scalar_lea.sflag [#allocation10], %s1067
        %s1069 = sand.u32 %s270, 1
        %s1070 = smul.addr %s1069, 2
        %s1071 = scalar_lea.vmem [#allocation9], %s1070
        // Predicated region
        $region65: #{tpu_custom_call.1} parent=55 // pred_check
          %p1072 = pneg %p254
        $region66: #{tpu_custom_call.1} parent=55 // pred_check_branch
          %1074 = sbr.rel (%p1072) target = $region68
        $region67: #{tpu_custom_call.1} parent=55 // pred_region
          %s1075 = smul.u32 2, %s32
          %s1077 = ssub.s32 256, 256
          %1078 = vsyncadd %s1063, %s1077
          %s1079 = smul.addr %s1075, 128
          %s1080 = scalar_lea.hbm %s9, %s1079
          %s1081 = sshll.u32 %s1066, 4
          %s1082 = int_to_ptr.vmem [resolvable:$true] %s1081
          %1087 = dma.vmem_to_hbm [thread:$0]  %s1082, 256, %s1080, %s1063, 128, 128, 8
        $region68: #{tpu_custom_call.1} parent=55 // pred_fallthru
          _
        // Predicated region
        $region69: #{tpu_custom_call.1} parent=55 // pred_check
          %p1088 = pneg %p280
        $region70: #{tpu_custom_call.1} parent=55 // pred_check_branch
          %1090 = sbr.rel (%p1088) target = $region72
        $region71: #{tpu_custom_call.1} parent=55 // pred_region
          %s1092 = ssub.s32 32, 32
          %1093 = vsyncadd %s1068, %s1092
          %s1094 = smul.addr %s32, 32
          %s1095 = scalar_lea.hbm %s10, %s1094
          %s1097 = sshll.u32 %s1071, 4
          %s1098 = int_to_ptr.vmem [resolvable:$true] %s1097
          %1100 = dma.vmem_to_hbm [thread:$0]  %s1098, 32, %s1095, %s1068
        $region72: #{tpu_custom_call.1} parent=55 // pred_fallthru
          _
      $region56: #{tpu_custom_call.1} parent=5 // pred_fallthru
        _
      %p1101 = scmp.le.s32.totalorder 2, %s27
      // Predicated region
      $region73: #{tpu_custom_call.1} parent=5 // pred_check
        %p1102 = pneg %p1101
      $region74: #{tpu_custom_call.1} parent=5 // pred_check_branch
        %1104 = sbr.rel (%p1102) target = $region76
      $region75: #{tpu_custom_call.1} parent=5 // pred_region
        %s1105 = ssub.s32 %s27, 2
        // Predicated region
        $region77: #{tpu_custom_call.1} parent=75 // pred_check
          %p1106 = pneg %p260
        $region78: #{tpu_custom_call.1} parent=75 // pred_check_branch
          %1108 = sbr.rel (%p1106) target = $region80
        $region79: #{tpu_custom_call.1} parent=75 // pred_region
          %s1109 = sand.u32 %s245, 1
          %s1110 = scalar_lea.sflag [#allocation5], %s1109
          %s1111 = sand.u32 %s245, 1
          %s1112 = smul.addr %s1111, 16
          %s1113 = scalar_lea.vmem [#allocation8], %s1112
          %1114 = dma.done %s1110, 256
        $region80: #{tpu_custom_call.1} parent=75 // pred_fallthru
          _
        // Predicated region
        $region81: #{tpu_custom_call.1} parent=75 // pred_check
          %p1115 = pneg %p286
        $region82: #{tpu_custom_call.1} parent=75 // pred_check_branch
          %1117 = sbr.rel (%p1115) target = $region84
        $region83: #{tpu_custom_call.1} parent=75 // pred_region
          %s1118 = sand.u32 %s271, 1
          %s1119 = scalar_lea.sflag [#allocation10], %s1118
          %s1120 = sand.u32 %s271, 1
          %s1121 = smul.addr %s1120, 2
          %s1122 = scalar_lea.vmem [#allocation9], %s1121
          %1123 = dma.done %s1119, 32
        $region84: #{tpu_custom_call.1} parent=75 // pred_fallthru
          _
      $region76: #{tpu_custom_call.1} parent=5 // pred_fallthru
        _
    $region6: #{tpu_custom_call.1} parent=1 // loop_footer
      %s31 = sadd.s32 1, %s27
    $region7: #{tpu_custom_call.1} parent=1 // loop_footer_branch
      %26 = sbr.rel target = $region3
    $region8: #{tpu_custom_call.1} parent=1 // loop_exit
      _
    %1124 = vsyncpa [#allocation4], 1
    %s1125 = scalar_lea.sflag [#allocation4], 1
    %1126 = vsyncpa %s1125, 1
    %1127 = vsyncpa [#allocation7], 1
    %1128 = vsyncpa [#allocation5], 1
    %s1129 = scalar_lea.sflag [#allocation5], 1
    %1130 = vsyncpa %s1129, 1
    %1131 = vsyncpa [#allocation10], 1
    %s1132 = scalar_lea.sflag [#allocation10], 1
    %1133 = vsyncpa %s1132, 1

</llo_original>
